<compile_context>
chip_gen: v7x
topology: tpu7x:2x2x1
jax: 0.10.0
libtpu: 0.0.40
codegen_flags: <defaults>
</compile_context>

<pallas_src>
import jax
import jax.numpy as jnp
from jax.experimental import pallas as pl
from jax.experimental.pallas import tpu as pltpu

NUM_ACTIONS = 4
NUM_INPUTS = 17
STACKED = 4
IN_DIM = NUM_INPUTS * STACKED      # 68
HIDDEN = 32
HEAD_OUT = 8                       # 4 probs + 1 value + 3 zero-pad lanes
DEFAULT_BLOCK_B = 4096             # ~8 MiB live f32 tiles; fits v5e default scoped VMEM


def _round_up(n, m):
    return ((n + m - 1) // m) * m


def _model_kernel(x_ref, w1_ref, b1_ref, w2_ref, b2_ref, out_ref):
    # Fused forward for both heads:
    #   h = tanh(x @ W1 + B1)   W1 = [w1_policy | w1_value]            (68, 64)
    #   y = h @ W2 + B2         W2 block-diagonal [w2_policy ; w2_value] (64, 8)
    # then a masked softmax over the first NUM_ACTIONS lanes of y.
    x = x_ref[...]
    h = jnp.tanh(
        jnp.dot(x, w1_ref[...], preferred_element_type=jnp.float32) + b1_ref[...]
    )
    h = h.astype(w2_ref.dtype)
    y = jnp.dot(h, w2_ref[...], preferred_element_type=jnp.float32) + b2_ref[...]

    lane = jax.lax.broadcasted_iota(jnp.int32, y.shape, dimension=1)
    is_logit = lane < NUM_ACTIONS
    masked = jnp.where(is_logit, y, -jnp.inf)
    m = jnp.max(masked, axis=-1, keepdims=True)
    e = jnp.where(is_logit, jnp.exp(masked - m), 0.0)
    denom = jnp.sum(e, axis=-1, keepdims=True)
    probs = e / denom                       # exact division; kernel is HBM-bound

    # lanes 0..3 -> probs, lane 4 -> value, lanes 5..7 -> zero padding
    out_ref[...] = jnp.where(is_logit, probs, y).astype(out_ref.dtype)


def _pack_params(params, dtype):
    """Pack the 8 per-head tensors into fused (W1, B1, W2, B2)."""
    (w1p, b1p, w2p, b2p, w1v, b1v, w2v, b2v) = params
    w1 = jnp.concatenate([w1p, w1v], axis=1).astype(dtype)           # (68, 64)
    b1 = jnp.concatenate([b1p, b1v], axis=1).astype(jnp.float32)     # (1, 64)
    # Block-diagonal W2: (2*HIDDEN, HEAD_OUT) = (64, 8)
    w2 = jnp.zeros((2 * HIDDEN, HEAD_OUT), dtype)
    w2 = w2.at[:HIDDEN, :NUM_ACTIONS].set(w2p.astype(dtype))
    w2 = w2.at[HIDDEN:, NUM_ACTIONS:NUM_ACTIONS + 1].set(w2v.astype(dtype))
    b2 = jnp.zeros((1, HEAD_OUT), jnp.float32)
    b2 = b2.at[:, :NUM_ACTIONS].set(b2p.astype(jnp.float32))
    b2 = b2.at[:, NUM_ACTIONS:NUM_ACTIONS + 1].set(b2v.astype(jnp.float32))
    return w1, b1, w2, b2


def model_forward(x, params, *, block_b=DEFAULT_BLOCK_B):
    """x: (B, 68).  Returns (probs (B, 4) f32, value (B, 1) f32)."""
    B = x.shape[0]
    compute_dtype = x.dtype  # pass bf16 x (and params) to halve the HBM read stream
    w1, b1, w2, b2 = _pack_params(params, compute_dtype)

    # Batch tile: multiple of 8 sublanes (or covers the whole batch).
    tb = min(block_b, _round_up(B, 8))
    grid = (pl.cdiv(B, tb),)   # partial last block: rows are row-local, extras dropped

    out = pl.pallas_call(
        _model_kernel,
        out_shape=jax.ShapeDtypeStruct((B, HEAD_OUT), jnp.float32),
        grid=grid,
        in_specs=[
            pl.BlockSpec((tb, IN_DIM), lambda i: (i, 0)),
            # Weights/biases: same block index every grid step -> VMEM resident.
            pl.BlockSpec((IN_DIM, 2 * HIDDEN), lambda i: (0, 0)),
            pl.BlockSpec((1, 2 * HIDDEN), lambda i: (0, 0)),
            pl.BlockSpec((2 * HIDDEN, HEAD_OUT), lambda i: (0, 0)),
            pl.BlockSpec((1, HEAD_OUT), lambda i: (0, 0)),
        ],
        out_specs=pl.BlockSpec((tb, HEAD_OUT), lambda i: (i, 0)),
        compiler_params=pltpu.CompilerParams(
            dimension_semantics=("parallel",),   # shard batch tiles across TCs (v7x)
            vmem_limit_bytes=32 << 20,           # headroom for block_b up to ~8192 f32
        ),
    )(x, w1, b1, w2, b2)

    probs = out[:, :NUM_ACTIONS]
    value = out[:, NUM_ACTIONS:NUM_ACTIONS + 1]
    return probs, value


def init_params(key):
    """Deterministic init mimicking torch.nn.Linear default (U[-1/sqrt(fan_in), +])."""
    def linear(key, fan_in, fan_out):
        kw, kb = jax.random.split(key)
        bound = 1.0 / jnp.sqrt(fan_in)
        w = jax.random.uniform(kw, (fan_in, fan_out), jnp.float32, -bound, bound)
        b = jax.random.uniform(kb, (1, fan_out), jnp.float32, -bound, bound)
        return w, b

    k1, k2, k3, k4 = jax.random.split(key, 4)
    w1p, b1p = linear(k1, IN_DIM, HIDDEN)
    w2p, b2p = linear(k2, HIDDEN, NUM_ACTIONS)
    w1v, b1v = linear(k3, IN_DIM, HIDDEN)
    w2v, b2v = linear(k4, HIDDEN, 1)
    return (w1p, b1p, w2p, b2p, w1v, b1v, w2v, b2v)


def reference_forward(x, params):
    (w1p, b1p, w2p, b2p, w1v, b1v, w2v, b2v) = params
    hi = jax.lax.Precision.HIGHEST
    h_p = jnp.tanh(jnp.dot(x, w1p, precision=hi) + b1p)
    probs = jax.nn.softmax(jnp.dot(h_p, w2p, precision=hi) + b2p, axis=1)
    h_v = jnp.tanh(jnp.dot(x, w1v, precision=hi) + b1v)
    value = jnp.dot(h_v, w2v, precision=hi) + b2v
    return probs, value


def _check(x, params, block_b):
    probs, value = model_forward(x, params, block_b=block_b)
    probs, value = jax.block_until_ready((probs, value))
    ref_probs, ref_value = reference_forward(x, params)
    B = x.shape[0]
    assert probs.shape == (B, NUM_ACTIONS) and value.shape == (B, 1)
    assert jnp.allclose(probs, ref_probs, atol=1e-3, rtol=1e-3)
    assert jnp.allclose(value, ref_value, atol=1e-3, rtol=1e-3)
    assert jnp.allclose(jnp.sum(probs, axis=1), 1.0, atol=1e-5)


if __name__ == "__main__":
    key = jax.random.PRNGKey(0)
    kx1, kx2, kp = jax.random.split(key, 3)
    params = init_params(kp)

    # Small batch (single-tile grid).
    _check(jax.random.normal(kx1, (8, IN_DIM), jnp.float32), params, block_b=DEFAULT_BLOCK_B)
    # Non-multiple-of-tile batch: exercises multi-step grid + partial last block.
    _check(jax.random.normal(kx2, (300, IN_DIM), jnp.float32), params, block_b=128)
    # Same batch with the default (large) tile.
    _check(jax.random.normal(kx2, (300, IN_DIM), jnp.float32), params, block_b=DEFAULT_BLOCK_B)

    print("KERNEL_OK")
</pallas_src>

<mosaic_0001>
module attributes {stable_mosaic.version = 11 : i64} {
  func.func @_model_kernel(%arg0: i32, %arg1: memref<8x68xf32, #tpu.memory_space<vmem>>, %arg2: memref<68x64xf32, #tpu.memory_space<vmem>>, %arg3: memref<1x64xf32, #tpu.memory_space<vmem>>, %arg4: memref<64x8xf32, #tpu.memory_space<vmem>>, %arg5: memref<1x8xf32, #tpu.memory_space<vmem>>, %arg6: memref<8x8xf32, #tpu.memory_space<vmem>>) attributes {dimension_semantics = [#tpu.dimension_semantics<parallel>], iteration_bounds = array<i64: 1>, scalar_prefetch = 0 : i64, scratch_operands = 0 : i64, tpu.core_type = #tpu.core_type<tc>, window_params = [{transform_indices = @transform_0, window_bounds = array<i64: 8, 68>}, {pipeline_mode = #tpu.pipeline_mode<synchronous>, transform_indices = @transform_1, window_bounds = array<i64: 68, 64>}, {pipeline_mode = #tpu.pipeline_mode<synchronous>, transform_indices = @transform_2, window_bounds = array<i64: 1, 64>}, {pipeline_mode = #tpu.pipeline_mode<synchronous>, transform_indices = @transform_3, window_bounds = array<i64: 64, 8>}, {pipeline_mode = #tpu.pipeline_mode<synchronous>, transform_indices = @transform_4, window_bounds = array<i64: 1, 8>}, {transform_indices = @transform_5, window_bounds = array<i64: 8, 8>}]} {
    %c0 = arith.constant 0 : index
    %c0_0 = arith.constant 0 : index
    %0 = vector.load %arg1[%c0, %c0_0] : memref<8x68xf32, #tpu.memory_space<vmem>>, vector<8x68xf32>
    %c0_1 = arith.constant 0 : index
    %c0_2 = arith.constant 0 : index
    %1 = vector.load %arg2[%c0_1, %c0_2] : memref<68x64xf32, #tpu.memory_space<vmem>>, vector<68x64xf32>
    %cst = arith.constant dense<0.000000e+00> : vector<8x64xf32>
    %2 = tpu.matmul %0, %1, %cst {dimension_numbers = #tpu.dot_dimension_numbers<[1], [0], [0], [1], [0, 0, 1, 1], [], []>} : vector<8x68xf32>, vector<68x64xf32>, vector<8x64xf32> -> vector<8x64xf32>
    %c0_3 = arith.constant 0 : index
    %c0_4 = arith.constant 0 : index
    %3 = vector.load %arg3[%c0_3, %c0_4] : memref<1x64xf32, #tpu.memory_space<vmem>>, vector<1x64xf32>
    %4 = vector.broadcast %3 : vector<1x64xf32> to vector<8x64xf32>
    %5 = arith.addf %2, %4 : vector<8x64xf32>
    %6 = math.tanh %5 : vector<8x64xf32>
    %c0_5 = arith.constant 0 : index
    %c0_6 = arith.constant 0 : index
    %7 = vector.load %arg4[%c0_5, %c0_6] : memref<64x8xf32, #tpu.memory_space<vmem>>, vector<64x8xf32>
    %cst_7 = arith.constant dense<0.000000e+00> : vector<8x8xf32>
    %8 = tpu.matmul %6, %7, %cst_7 {dimension_numbers = #tpu.dot_dimension_numbers<[1], [0], [0], [1], [0, 0, 1, 1], [], []>} : vector<8x64xf32>, vector<64x8xf32>, vector<8x8xf32> -> vector<8x8xf32>
    %c0_8 = arith.constant 0 : index
    %c0_9 = arith.constant 0 : index
    %9 = vector.load %arg5[%c0_8, %c0_9] : memref<1x8xf32, #tpu.memory_space<vmem>>, vector<1x8xf32>
    %10 = vector.broadcast %9 : vector<1x8xf32> to vector<8x8xf32>
    %11 = arith.addf %8, %10 : vector<8x8xf32>
    %12 = tpu.iota {dimensions = array<i32: 1>} : vector<8x8xi32>
    %c4_i32 = arith.constant 4 : i32
    %13 = vector.broadcast %c4_i32 : i32 to vector<8x8xi32>
    %14 = arith.cmpi slt, %12, %13 : vector<8x8xi32>
    %cst_10 = arith.constant 0xFF800000 : f32
    %15 = vector.broadcast %cst_10 : f32 to vector<8x8xf32>
    %16 = arith.select %14, %11, %15 : vector<8x8xi1>, vector<8x8xf32>
    %cst_11 = arith.constant dense<0xFF800000> : vector<8xf32>
    %17 = vector.multi_reduction <maximumf>, %16, %cst_11 [1] : vector<8x8xf32> to vector<8xf32>
    %18 = vector.shape_cast %17 : vector<8xf32> to vector<8x1xf32>
    %19 = vector.broadcast %18 : vector<8x1xf32> to vector<8x8xf32>
    %20 = arith.subf %16, %19 : vector<8x8xf32>
    %21 = math.exp %20 : vector<8x8xf32>
    %cst_12 = arith.constant 0.000000e+00 : f32
    %22 = vector.broadcast %cst_12 : f32 to vector<8x8xf32>
    %23 = arith.select %14, %21, %22 : vector<8x8xi1>, vector<8x8xf32>
    %cst_13 = arith.constant dense<0.000000e+00> : vector<8xf32>
    %24 = vector.multi_reduction <add>, %23, %cst_13 [1] : vector<8x8xf32> to vector<8xf32>
    %25 = vector.shape_cast %24 : vector<8xf32> to vector<8x1xf32>
    %26 = vector.broadcast %25 : vector<8x1xf32> to vector<8x8xf32>
    %27 = arith.divf %23, %26 : vector<8x8xf32>
    %28 = arith.select %14, %27, %11 : vector<8x8xi1>, vector<8x8xf32>
    %c0_14 = arith.constant 0 : index
    %c0_15 = arith.constant 0 : index
    %29 = vector.load %arg6[%c0_14, %c0_15] : memref<8x8xf32, #tpu.memory_space<vmem>>, vector<8x8xf32>
    tpu.vector_store %arg6[%c0_14, %c0_15], %28 {strides = array<i32>} : memref<8x8xf32, #tpu.memory_space<vmem>>, vector<8x8xf32>,
    return
  }
  func.func @transform_0(%arg0: i32) -> (i32, i32) {
    %c0_i32 = arith.constant 0 : i32
    %c0_i32_0 = arith.constant 0 : i32
    return %arg0, %c0_i32 : i32, i32
  }
  func.func @transform_1(%arg0: i32) -> (i32, i32) {
    %c0_i32 = arith.constant 0 : i32
    %c0_i32_0 = arith.constant 0 : i32
    %c0_i32_1 = arith.constant 0 : i32
    return %c0_i32, %c0_i32_0 : i32, i32
  }
  func.func @transform_2(%arg0: i32) -> (i32, i32) {
    %c0_i32 = arith.constant 0 : i32
    %c0_i32_0 = arith.constant 0 : i32
    %c0_i32_1 = arith.constant 0 : i32
    return %c0_i32, %c0_i32_0 : i32, i32
  }
  func.func @transform_3(%arg0: i32) -> (i32, i32) {
    %c0_i32 = arith.constant 0 : i32
    %c0_i32_0 = arith.constant 0 : i32
    %c0_i32_1 = arith.constant 0 : i32
    return %c0_i32, %c0_i32_0 : i32, i32
  }
  func.func @transform_4(%arg0: i32) -> (i32, i32) {
    %c0_i32 = arith.constant 0 : i32
    %c0_i32_0 = arith.constant 0 : i32
    %c0_i32_1 = arith.constant 0 : i32
    return %c0_i32, %c0_i32_0 : i32, i32
  }
  func.func @transform_5(%arg0: i32) -> (i32, i32) {
    %c0_i32 = arith.constant 0 : i32
    %c0_i32_0 = arith.constant 0 : i32
    return %arg0, %c0_i32 : i32, i32
  }
}

</mosaic_0001>

<llo_original>
// kernel: tpu_custom_call.1
$region0: #{tpu_custom_call.1}
  #allocation0 [shape = 'u32[]', space=smem, size = 0x4, offset = 0x4, fixed_abs, tag = 'smem constant byte address 0x4 - core index']
  #allocation1 [shape = 'u32[144,128]{1,0:T(1,128)}', space=vmem, size = 0x12000, scoped, tag = 'internal scratch']
  %s0 = inlined_call_operand.vmem [shape: f32[8,68], index: 0, kind: input, shape index: {}]
  %s1 = inlined_call_operand.vmem [shape: f32[68,64], index: 1, kind: input, shape index: {}]
  %s2 = inlined_call_operand.vmem [shape: f32[1,64], index: 2, kind: input, shape index: {}]
  %s3 = inlined_call_operand.vmem [shape: f32[64,8], index: 3, kind: input, shape index: {}]
  %s4 = inlined_call_operand.vmem [shape: f32[1,8], index: 4, kind: input, shape index: {}]
  %s5 = inlined_call_operand.hbm [shape: f32[8,8], index: 5, kind: output, shape index: {}]
  %s6 = sld [smem:[#allocation0]]
  $region30: #{tpu_custom_call.1} parent=0
    _
  %s8 = ssub.s32 1, %s6
  %s9 = scalar_select 0, %s8, %s6
  $region1: #{tpu_custom_call.1} parent=0
    #allocation2 [shape = 'u8[4096]{0}', space=vmem, size = 0x1000, scoped, tag = 'output window, operand 0, single buffered']
    #allocation3 [shape = 's32[1]{0}', space=sflag, size = 0x4, scoped, tag = 'scoped memory for tpu_custom_call.1']
    %10 = vsyncpa [#allocation3], 0
    // Predicated region
    $region2: #{tpu_custom_call.1} parent=1 // pred_check
      _
    $region3: #{tpu_custom_call.1} parent=1 // pred_check_branch
      %12 = sbr.rel (0) target = $region5
    $region4: #{tpu_custom_call.1} parent=1 // pred_region
      _
    $region5: #{tpu_custom_call.1} parent=1 // pred_fallthru
      _
    // Predicated region
    $region6: #{tpu_custom_call.1} parent=1 // pred_check
      _
    $region7: #{tpu_custom_call.1} parent=1 // pred_check_branch
      %14 = sbr.rel (0) target = $region9
    $region8: #{tpu_custom_call.1} parent=1 // pred_region
      _
    $region9: #{tpu_custom_call.1} parent=1 // pred_fallthru
      _
    // Predicated region
    $region10: #{tpu_custom_call.1} parent=1 // pred_check
      _
    $region11: #{tpu_custom_call.1} parent=1 // pred_check_branch
      %16 = sbr.rel (0) target = $region13
    $region12: #{tpu_custom_call.1} parent=1 // pred_region
      _
    $region13: #{tpu_custom_call.1} parent=1 // pred_fallthru
      _
    // Predicated region
    $region14: #{tpu_custom_call.1} parent=1 // pred_check
      _
    $region15: #{tpu_custom_call.1} parent=1 // pred_check_branch
      %18 = sbr.rel (0) target = $region17
    $region16: #{tpu_custom_call.1} parent=1 // pred_region
      _
    $region17: #{tpu_custom_call.1} parent=1 // pred_fallthru
      _
    // Predicated region
    $region18: #{tpu_custom_call.1} parent=1 // pred_check
      _
    $region19: #{tpu_custom_call.1} parent=1 // pred_check_branch
      %20 = sbr.rel (0) target = $region21
    $region20: #{tpu_custom_call.1} parent=1 // pred_region
      _
    $region21: #{tpu_custom_call.1} parent=1 // pred_fallthru
      _
    %v21 = vld [vmem:[%s0] sm:$0xff]
    %v22 = vld [vmem:[%s1] sm:$0xff]
    %v23 = vld [vmem:[%s1 + $0x8] sm:$0xff]
    %v24 = vld [vmem:[%s1 + $0x10] sm:$0xff]
    %v25 = vld [vmem:[%s1 + $0x18] sm:$0xff]
    %v26 = vld [vmem:[%s1 + $0x20] sm:$0xff]
    %v27 = vld [vmem:[%s1 + $0x28] sm:$0xff]
    %v28 = vld [vmem:[%s1 + $0x30] sm:$0xff]
    %v29 = vld [vmem:[%s1 + $0x38] sm:$0xff]
    %v30 = vld [vmem:[%s1 + $0x40] sm:$0xf]
    %v31 = vld [vmem:[%s2] sm:$0x1]
    %v33 = vlaneseq
    %v34 = vshrl.u32 %v33, 7
    %v35 = vsub.s32 0, %v34
    %v36 = vrot.slane %v31, %v35
    %vm38 = vcmask 556032
    %v40 = vsel %vm38, %v21, 0
    %vm42 = vcmask 1043456
    %v44 = vsel %vm42, %v30, 0
    %46 = vmatprep.subr.mxu0 0.0
    %47 = vmatpush1.msra.mxu0 %v22
    %48 = vmatprep.subr.mxu0 0.0
    %49 = vmatpush1.msra.mxu0 %v23
    %50 = vmatprep.subr.mxu0 0.0
    %51 = vmatpush1.msra.mxu0 %v24
    %52 = vmatprep.subr.mxu0 0.0
    %53 = vmatpush1.msra.mxu0 %v25
    %54 = vmatprep.subr.mxu0 0.0
    %55 = vmatpush1.msra.mxu0 %v26
    %56 = vmatprep.subr.mxu0 0.0
    %57 = vmatpush1.msra.mxu0 %v27
    %58 = vmatprep.subr.mxu0 0.0
    %59 = vmatpush1.msra.mxu0 %v28
    %60 = vmatprep.subr.mxu0 0.0
    %61 = vmatpush1.msra.mxu0 %v29
    %62 = vmatprep.subr.mxu0 0.0
    %63 = vmatpush1.msra.mxu0 %v44
    %64 = vmatprep.subr.mxu0 0.0
    %65 = vmatpush1.msra.mxu0 0.0
    %66 = vmatprep.subr.mxu0 0.0
    %67 = vmatpush1.msra.mxu0 0.0
    %68 = vmatprep.subr.mxu0 0.0
    %69 = vmatpush1.msra.mxu0 0.0
    %70 = vmatprep.subr.mxu0 0.0
    %71 = vmatpush1.msra.mxu0 0.0
    %72 = vmatprep.subr.mxu0 0.0
    %73 = vmatpush1.msra.mxu0 0.0
    %74 = vmatprep.subr.mxu0 0.0
    %75 = vmatpush1.msra.mxu0 0.0
    %76 = vmatprep.subr.mxu0 0.0
    %77 = vmatpush1.msra.mxu0 0.0
    %78 = vmatprep.subr.mxu0 0.0
    %79 = vmatpush1.msra.mxu0 0.0
    %80 = vmatprep.subr.mxu0 0.0
    %81 = vmatpush1.msra.mxu0 0.0
    %82 = vmatprep.subr.mxu0 0.0
    %83 = vmatpush1.msra.mxu0 0.0
    %84 = vmatprep.subr.mxu0 0.0
    %85 = vmatpush1.msra.mxu0 0.0
    %86 = vmatprep.subr.mxu0 0.0
    %87 = vmatpush1.msra.mxu0 0.0
    %88 = vmatprep.subr.mxu0 0.0
    %89 = vmatpush1.msra.mxu0 0.0
    %90 = vmatprep.subr.mxu0 0.0
    %91 = vmatpush1.msra.mxu0 0.0
    %92 = vmatprep.subr.mxu0 0.0
    %93 = vmatpush1.msra.mxu0 0.0
    %94 = vmatprep.subr.mxu0 0.0
    %95 = vmatpush1.msra.mxu0 0.0
    %96 = vmatprep.subr.mxu0 0.0
    %97 = vmatpush1.msra.mxu0 0.0
    %98 = vmatprep.subr.mxu0 0.0
    %99 = vmatpush1.msra.mxu0 0.0
    %100 = vmatprep.subr.mxu0 0.0
    %101 = vmatpush1.msra.mxu0 0.0
    %102 = vmatprep.subr.mxu0 0.0
    %103 = vmatpush1.msra.mxu0 0.0
    %104 = vmatprep.subr.mxu0 0.0
    %105 = vmatpush1.msra.mxu0 0.0
    %106 = vmatprep.subr.mxu0 0.0
    %107 = vmatpush1.msra.mxu0 0.0
    %108 = vmatprep.subr.mxu0 0.0
    %109 = vmatpush1.msra.mxu0 0.0
    %110 = vmatprep.mubr.f32.mxu0 0.0
    %111 = vmatmul.mubr.f32.gmra.mrb[0].mxu0 %v40
    %v112 = vpop.f32.mrb[0].mxu0
    %v113 = vadd.f32 %v36, %v112
    %v114 = vpop.f32.mrb[0].mxu0
    %115 = vdwg.mxu0
    %v116 = vtanh.pop %v113
    %v117 = vld [vmem:[%s3] sm:$0xff]
    %v118 = vld [vmem:[%s3 + $0x8] sm:$0xff]
    %v119 = vld [vmem:[%s3 + $0x10] sm:$0xff]
    %v120 = vld [vmem:[%s3 + $0x18] sm:$0xff]
    %v121 = vld [vmem:[%s3 + $0x20] sm:$0xff]
    %v122 = vld [vmem:[%s3 + $0x28] sm:$0xff]
    %v123 = vld [vmem:[%s3 + $0x30] sm:$0xff]
    %v124 = vld [vmem:[%s3 + $0x38] sm:$0xff]
    %v125 = vld [vmem:[%s4] sm:$0x1]
    %v127 = vlaneseq
    %v128 = vshrl.u32 %v127, 7
    %v129 = vsub.s32 0, %v128
    %v130 = vrot.slane %v125, %v129
    %vm132 = vcmask 523264
    %v134 = vsel %vm132, %v116, 0
    %136 = vmatprep.subr.mxu0 0.0
    %137 = vmatpush1.msra.mxu0 %v117
    %138 = vmatprep.subr.mxu0 0.0
    %139 = vmatpush1.msra.mxu0 %v118
    %140 = vmatprep.subr.mxu0 0.0
    %141 = vmatpush1.msra.mxu0 %v119
    %142 = vmatprep.subr.mxu0 0.0
    %143 = vmatpush1.msra.mxu0 %v120
    %144 = vmatprep.subr.mxu0 0.0
    %145 = vmatpush1.msra.mxu0 %v121
    %146 = vmatprep.subr.mxu0 0.0
    %147 = vmatpush1.msra.mxu0 %v122
    %148 = vmatprep.subr.mxu0 0.0
    %149 = vmatpush1.msra.mxu0 %v123
    %150 = vmatprep.subr.mxu0 0.0
    %151 = vmatpush1.msra.mxu0 %v124
    %152 = vmatprep.subr.mxu0 0.0
    %153 = vmatpush1.msra.mxu0 0.0
    %154 = vmatprep.subr.mxu0 0.0
    %155 = vmatpush1.msra.mxu0 0.0
    %156 = vmatprep.subr.mxu0 0.0
    %157 = vmatpush1.msra.mxu0 0.0
    %158 = vmatprep.subr.mxu0 0.0
    %159 = vmatpush1.msra.mxu0 0.0
    %160 = vmatprep.subr.mxu0 0.0
    %161 = vmatpush1.msra.mxu0 0.0
    %162 = vmatprep.subr.mxu0 0.0
    %163 = vmatpush1.msra.mxu0 0.0
    %164 = vmatprep.subr.mxu0 0.0
    %165 = vmatpush1.msra.mxu0 0.0
    %166 = vmatprep.subr.mxu0 0.0
    %167 = vmatpush1.msra.mxu0 0.0
    %168 = vmatprep.subr.mxu0 0.0
    %169 = vmatpush1.msra.mxu0 0.0
    %170 = vmatprep.subr.mxu0 0.0
    %171 = vmatpush1.msra.mxu0 0.0
    %172 = vmatprep.subr.mxu0 0.0
    %173 = vmatpush1.msra.mxu0 0.0
    %174 = vmatprep.subr.mxu0 0.0
    %175 = vmatpush1.msra.mxu0 0.0
    %176 = vmatprep.subr.mxu0 0.0
    %177 = vmatpush1.msra.mxu0 0.0
    %178 = vmatprep.subr.mxu0 0.0
    %179 = vmatpush1.msra.mxu0 0.0
    %180 = vmatprep.subr.mxu0 0.0
    %181 = vmatpush1.msra.mxu0 0.0
    %182 = vmatprep.subr.mxu0 0.0
    %183 = vmatpush1.msra.mxu0 0.0
    %184 = vmatprep.subr.mxu0 0.0
    %185 = vmatpush1.msra.mxu0 0.0
    %186 = vmatprep.subr.mxu0 0.0
    %187 = vmatpush1.msra.mxu0 0.0
    %188 = vmatprep.subr.mxu0 0.0
    %189 = vmatpush1.msra.mxu0 0.0
    %190 = vmatprep.subr.mxu0 0.0
    %191 = vmatpush1.msra.mxu0 0.0
    %192 = vmatprep.subr.mxu0 0.0
    %193 = vmatpush1.msra.mxu0 0.0
    %194 = vmatprep.subr.mxu0 0.0
    %195 = vmatpush1.msra.mxu0 0.0
    %196 = vmatprep.subr.mxu0 0.0
    %197 = vmatpush1.msra.mxu0 0.0
    %198 = vmatprep.subr.mxu0 0.0
    %199 = vmatpush1.msra.mxu0 0.0
    %200 = vmatprep.mubr.f32.mxu0 0.0
    %201 = vmatmul.mubr.f32.gmra.mrb[0].mxu0 %v134
    %v202 = vpop.f32.mrb[0].mxu0
    %v203 = vadd.f32 %v130, %v202
    %v204 = vpop.f32.mrb[0].mxu0
    %205 = vdwg.mxu0
    %v206 = vlaneseq
    %v207 = vand.u32 %v206, 127
    %vm208 = vcmp.lt.s32.totalorder %v207, 4
    %v209 = vsel %vm208, %v203, -inf
    %vm210 = vcmask 64512
    %v211 = vsel %vm210, %v209, -inf
    %212 = vmax.xlane.f32.xlu0 %v211
    %v213 = vpop.xlane.xlu0 %212
    %v214 = vsub.f32 %v209, %v213
    %v215 = vmul.f32 %v214, 1.442695
    %v216 = vpow.pop %v215
    %v217 = vsel %vm208, %v216, 0.0
    %v218 = vsel %vm210, %v217, 0.0
    %219 = vadd.xlane.f32.xlu0 %v218
    %v220 = vpop.xlane.xlu0 %219
    %v221 = vrcp.pop %v220
    %v222 = vmul.f32 %v217, %v221
    %v223 = vsel %vm208, %v222, %v203
    %224 = vst.msk [vmem:[#allocation2] sm:$0xff] %vm210, %v223
    // Predicated region
    $region22: #{tpu_custom_call.1} parent=1 // pred_check
      _
    $region23: #{tpu_custom_call.1} parent=1 // pred_check_branch
      %226 = sbr.rel (0) target = $region25
    $region24: #{tpu_custom_call.1} parent=1 // pred_region
      %s228 = ssub.s32 128, 128
      %229 = vsyncadd [#allocation3], %s228
      %s231 = sshll.u32 [#allocation2], 4
      %s232 = int_to_ptr.vmem [resolvable:$true] %s231
      %234 = dma.vmem_to_hbm [thread:$0]  %s232, 128, %s5, [#allocation3]
    $region25: #{tpu_custom_call.1} parent=1 // pred_fallthru
      _
    // Predicated region
    $region26: #{tpu_custom_call.1} parent=1 // pred_check
      _
    $region27: #{tpu_custom_call.1} parent=1 // pred_check_branch
      %236 = sbr.rel (0) target = $region29
    $region28: #{tpu_custom_call.1} parent=1 // pred_region
      %237 = dma.done [#allocation3], 128
    $region29: #{tpu_custom_call.1} parent=1 // pred_fallthru
      _
    %238 = vsyncpa [#allocation3], 1

</llo_original>
